<compile_context>
chip_gen: v5e
topology: v5e:2x2
jax: 0.10.0
libtpu: 0.0.40
codegen_flags: <defaults>
</compile_context>

<pallas_src>
import functools
import math

import jax
import jax.numpy as jnp
from jax import lax
from jax.experimental import pallas as pl
from jax.experimental.pallas import tpu as pltpu


# contract the last dim of both operands: q @ k^T without materializing a transpose
NT_DIM_NUMBERS = (((1,), (1,)), ((), ()))


def mha_kernel(xq_ref, xkv_ref, wq_ref, wk_ref, wv_ref, bq_ref, bk_ref, bv_ref,
               wo_ref, bo_ref, o_ref, acc_ref, *, head_dim, compute_dtype, approx_recip):
    h = pl.program_id(2)

    @pl.when(h == 0)
    def _init():
        acc_ref[...] = jnp.zeros_like(acc_ref)

    cdt = compute_dtype
    scale = 1.0 / math.sqrt(head_dim)

    xq = xq_ref[0].astype(cdt)        # (TQ, D)  query rows of this tile
    xs = xkv_ref[0].astype(cdt)       # (S,  D)  full sequence (for K/V of this head)

    # Per-head projections: full-D contraction on the MXU, f32 accumulation.
    q = jnp.dot(xq, wq_ref[0].astype(cdt), preferred_element_type=jnp.float32) + bq_ref[0]
    q = (q * scale).astype(cdt)       # fold 1/sqrt(dh) into q (O(TQ*dh) multiplies)
    k = (jnp.dot(xs, wk_ref[0].astype(cdt),
                 preferred_element_type=jnp.float32) + bk_ref[0]).astype(cdt)   # (S, dh)
    v = (jnp.dot(xs, wv_ref[0].astype(cdt),
                 preferred_element_type=jnp.float32) + bv_ref[0]).astype(cdt)   # (S, dh)

    # scores = q @ k^T (NT dot_general, no explicit transpose), f32.
    s = lax.dot_general(q, k, NT_DIM_NUMBERS, preferred_element_type=jnp.float32)  # (TQ, S)

    # Numerically-stable softmax in f32; divide goes to the EUP via reciprocal.
    m = jnp.max(s, axis=-1, keepdims=True)
    e = jnp.exp(s - m)
    p = e * pl.reciprocal(jnp.sum(e, axis=-1, keepdims=True), approx=approx_recip)
    # TODO(synk): dropout(p=0.1) on `p` (training mode) and masking not implemented.

    o_h = jnp.dot(p.astype(cdt), v, preferred_element_type=jnp.float32)             # (TQ, dh)

    # Per-head slice of the output projection accumulated into f32 scratch —
    # replaces the concat-then-matmul of the naive formulation.
    acc_ref[...] += jnp.dot(o_h.astype(cdt), wo_ref[0].astype(cdt),
                            preferred_element_type=jnp.float32)

    @pl.when(h == pl.num_programs(2) - 1)
    def _finalize():
        o_ref[0] = (acc_ref[...] + bo_ref[...]).astype(o_ref.dtype)


def multi_head_attention(x, w_qkv, b_qkv, w_out, b_out, *, n_heads,
                         tq=None, compute_dtype=jnp.bfloat16):
    """x: (B, S, D); w_qkv: (D, 3D); b_qkv: (1, 3D); w_out: (D, D); b_out: (1, D)."""
    B, S, D = x.shape
    assert D % n_heads == 0
    dh = D // n_heads

    # Query-row tile. 256 is a good default on v6e/v7x; pass tq=128 on v5e.
    if tq is None:
        if S <= 256:
            tq = S
        else:
            tq = next((c for c in (256, 128, 64, 32, 16, 8) if S % c == 0), S)
    assert S % tq == 0 and (tq == S or tq % 8 == 0)
    nq = S // tq

    # Host-side head-major weight/bias layouts (one-time reshapes, no in-kernel relayout).
    def w_heads(w):                     # (D, D) -> (H, D, dh)
        return w.reshape(D, n_heads, dh).transpose(1, 0, 2)

    def b_heads(b):                     # (D,)   -> (H, 1, dh)
        return b.reshape(n_heads, 1, dh)

    wq = w_heads(w_qkv[:, :D])
    wk = w_heads(w_qkv[:, D:2 * D])
    wv = w_heads(w_qkv[:, 2 * D:])
    bq = b_heads(b_qkv[0, :D])
    bk = b_heads(b_qkv[0, D:2 * D])
    bv = b_heads(b_qkv[0, 2 * D:])
    wo = w_out.reshape(n_heads, dh, D)  # rows of W_out are already head-major

    kernel = functools.partial(
        mha_kernel,
        head_dim=dh,
        compute_dtype=compute_dtype,
        approx_recip=(jnp.dtype(compute_dtype) != jnp.dtype(jnp.float32)),
    )

    head_w_spec = pl.BlockSpec((1, D, dh), lambda b, q, h: (h, 0, 0))
    head_b_spec = pl.BlockSpec((1, 1, dh), lambda b, q, h: (h, 0, 0))

    return pl.pallas_call(
        kernel,
        out_shape=jax.ShapeDtypeStruct((B, S, D), x.dtype),
        grid_spec=pltpu.PrefetchScalarGridSpec(
            num_scalar_prefetch=0,
            grid=(B, nq, n_heads),
            in_specs=[
                # query-row tile of x (re-fetched per (b, q); constant over heads)
                pl.BlockSpec((1, tq, D), lambda b, q, h: (b, q, 0)),
                # full sequence of x for K/V (constant over q and heads -> fetched once per b)
                pl.BlockSpec((1, S, D), lambda b, q, h: (b, 0, 0)),
                head_w_spec, head_w_spec, head_w_spec,      # W_q, W_k, W_v  (per-head blocks)
                head_b_spec, head_b_spec, head_b_spec,      # b_q, b_k, b_v
                pl.BlockSpec((1, dh, D), lambda b, q, h: (h, 0, 0)),   # W_out rows of this head
                pl.BlockSpec((1, D), lambda b, q, h: (0, 0)),          # b_out
            ],
            out_specs=pl.BlockSpec((1, tq, D), lambda b, q, h: (b, q, 0)),
            scratch_shapes=[pltpu.VMEM((tq, D), jnp.float32)],         # output accumulator
        ),
        compiler_params=pltpu.CompilerParams(
            # B and q-tile axes are independent (2 parallel axes -> both v7x TCs busy);
            # head axis carries the output accumulator -> "arbitrary".
            dimension_semantics=("parallel", "parallel", "arbitrary"),
            vmem_limit_bytes=48 * 1024 * 1024,
        ),
    )(x, x, wq, wk, wv, bq, bk, bv, wo, b_out)


def reference_mha(x, w_qkv, b_qkv, w_out, b_out, n_heads):
    """Pure-JAX reference mirroring the PyTorch forward (mask=None, eval)."""
    B, S, D = x.shape
    dh = D // n_heads
    qkv = x @ w_qkv + b_qkv[0]
    q, k, v = qkv[..., :D], qkv[..., D:2 * D], qkv[..., 2 * D:]

    def split(t):
        return t.reshape(B, S, n_heads, dh).transpose(0, 2, 1, 3)   # (B, H, S, dh)

    q, k, v = split(q), split(k), split(v)
    scores = jnp.einsum("bhqd,bhkd->bhqk", q, k) / math.sqrt(dh)
    scores = jax.nn.softmax(scores, axis=-1)
    o = jnp.einsum("bhqk,bhkd->bhqd", scores, v)
    o = o.transpose(0, 2, 1, 3).reshape(B, S, D)
    return o @ w_out + b_out[0]


if __name__ == "__main__":
    B, S, D = 2, 8, 32
    n_heads = 4

    key = jax.random.PRNGKey(0)
    kx, k1, k2, k3, k4 = jax.random.split(key, 5)

    x = jax.random.normal(kx, (B, S, D), dtype=jnp.float32)

    # Parameters of Linear(D, 3D) and Linear(D, D), stored transposed as (in, out)
    # so the kernel computes x @ W + b.
    bound1 = 1.0 / math.sqrt(D)
    w_qkv = jax.random.uniform(k1, (D, 3 * D), jnp.float32, -bound1, bound1)
    b_qkv = jax.random.uniform(k2, (1, 3 * D), jnp.float32, -bound1, bound1)
    w_out = jax.random.uniform(k3, (D, D), jnp.float32, -bound1, bound1)
    b_out = jax.random.uniform(k4, (1, D), jnp.float32, -bound1, bound1)

    ref = reference_mha(x, w_qkv, b_qkv, w_out, b_out, n_heads)

    # f32-operand path: tight check against the pure-JAX reference.
    out_f32 = multi_head_attention(x, w_qkv, b_qkv, w_out, b_out,
                                   n_heads=n_heads, compute_dtype=jnp.float32)
    out_f32 = jax.block_until_ready(out_f32)
    assert out_f32.shape == (B, S, D)
    assert jnp.allclose(out_f32, ref, atol=1e-3, rtol=1e-3), "f32 path mismatch vs reference"

    # Default bf16-MXU-operand path (f32 accumulation): looser tolerance.
    out_bf16 = multi_head_attention(x, w_qkv, b_qkv, w_out, b_out, n_heads=n_heads)
    out_bf16 = jax.block_until_ready(out_bf16)
    assert out_bf16.shape == (B, S, D)
    assert jnp.allclose(out_bf16, ref, atol=5e-2, rtol=5e-2), "bf16 path mismatch vs reference"

    print("KERNEL_OK")
</pallas_src>

<mosaic_0001>
module attributes {stable_mosaic.version = 11 : i64} {
  func.func @mha_kernel(%arg0: i32, %arg1: i32, %arg2: i32, %arg3: memref<1x8x32xf32, #tpu.memory_space<vmem>>, %arg4: memref<1x8x32xf32, #tpu.memory_space<vmem>>, %arg5: memref<1x32x8xf32, #tpu.memory_space<vmem>>, %arg6: memref<1x32x8xf32, #tpu.memory_space<vmem>>, %arg7: memref<1x32x8xf32, #tpu.memory_space<vmem>>, %arg8: memref<1x1x8xf32, #tpu.memory_space<vmem>>, %arg9: memref<1x1x8xf32, #tpu.memory_space<vmem>>, %arg10: memref<1x1x8xf32, #tpu.memory_space<vmem>>, %arg11: memref<1x8x32xf32, #tpu.memory_space<vmem>>, %arg12: memref<1x32xf32, #tpu.memory_space<vmem>>, %arg13: memref<1x8x32xf32, #tpu.memory_space<vmem>>, %arg14: memref<8x32xf32, #tpu.memory_space<vmem>>) attributes {dimension_semantics = [#tpu.dimension_semantics<parallel>, #tpu.dimension_semantics<parallel>, #tpu.dimension_semantics<arbitrary>], iteration_bounds = array<i64: 2, 1, 4>, scalar_prefetch = 0 : i64, scratch_operands = 1 : i64, tpu.core_type = #tpu.core_type<tc>, window_params = [{transform_indices = @transform_0, window_bounds = array<i64: 1, 8, 32>}, {transform_indices = @transform_1, window_bounds = array<i64: 1, 8, 32>}, {transform_indices = @transform_2, window_bounds = array<i64: 1, 32, 8>}, {transform_indices = @transform_3, window_bounds = array<i64: 1, 32, 8>}, {transform_indices = @transform_4, window_bounds = array<i64: 1, 32, 8>}, {transform_indices = @transform_5, window_bounds = array<i64: 1, 1, 8>}, {transform_indices = @transform_6, window_bounds = array<i64: 1, 1, 8>}, {transform_indices = @transform_7, window_bounds = array<i64: 1, 1, 8>}, {transform_indices = @transform_8, window_bounds = array<i64: 1, 8, 32>}, {pipeline_mode = #tpu.pipeline_mode<synchronous>, transform_indices = @transform_9, window_bounds = array<i64: 1, 32>}, {transform_indices = @transform_10, window_bounds = array<i64: 1, 8, 32>}]} {
    %c0_i32 = arith.constant 0 : i32
    %0 = arith.cmpi eq, %arg2, %c0_i32 : i32
    %1 = arith.extui %0 : i1 to i32
    %c0_i32_0 = arith.constant 0 : i32
    %2 = arith.cmpi ne, %1, %c0_i32_0 : i32
    scf.if %2 {
      %cst_40 = arith.constant 0.000000e+00 : f32
      %51 = vector.broadcast %cst_40 : f32 to vector<8x32xf32>
      %c0_41 = arith.constant 0 : index
      %c0_42 = arith.constant 0 : index
      %52 = vector.load %arg14[%c0_41, %c0_42] : memref<8x32xf32, #tpu.memory_space<vmem>>, vector<8x32xf32>
      tpu.vector_store %arg14[%c0_41, %c0_42], %51 {strides = array<i32>} : memref<8x32xf32, #tpu.memory_space<vmem>>, vector<8x32xf32>,
    } else {
    }
    %c0 = arith.constant 0 : index
    %c0_1 = arith.constant 0 : index
    %c0_2 = arith.constant 0 : index
    %3 = vector.load %arg3[%c0, %c0_1, %c0_2] : memref<1x8x32xf32, #tpu.memory_space<vmem>>, vector<1x8x32xf32>
    %4 = vector.shape_cast %3 : vector<1x8x32xf32> to vector<8x32xf32>
    %c0_3 = arith.constant 0 : index
    %c0_4 = arith.constant 0 : index
    %c0_5 = arith.constant 0 : index
    %5 = vector.load %arg4[%c0_3, %c0_4, %c0_5] : memref<1x8x32xf32, #tpu.memory_space<vmem>>, vector<1x8x32xf32>
    %6 = vector.shape_cast %5 : vector<1x8x32xf32> to vector<8x32xf32>
    %c0_6 = arith.constant 0 : index
    %c0_7 = arith.constant 0 : index
    %c0_8 = arith.constant 0 : index
    %7 = vector.load %arg5[%c0_6, %c0_7, %c0_8] : memref<1x32x8xf32, #tpu.memory_space<vmem>>, vector<1x32x8xf32>
    %8 = vector.shape_cast %7 : vector<1x32x8xf32> to vector<32x8xf32>
    %cst = arith.constant dense<0.000000e+00> : vector<8x8xf32>
    %9 = tpu.matmul %4, %8, %cst {dimension_numbers = #tpu.dot_dimension_numbers<[1], [0], [0], [1], [0, 0, 1, 1], [], []>} : vector<8x32xf32>, vector<32x8xf32>, vector<8x8xf32> -> vector<8x8xf32>
    %c0_9 = arith.constant 0 : index
    %c0_10 = arith.constant 0 : index
    %c0_11 = arith.constant 0 : index
    %10 = vector.load %arg8[%c0_9, %c0_10, %c0_11] : memref<1x1x8xf32, #tpu.memory_space<vmem>>, vector<1x1x8xf32>
    %11 = vector.shape_cast %10 : vector<1x1x8xf32> to vector<1x8xf32>
    %12 = vector.broadcast %11 : vector<1x8xf32> to vector<8x8xf32>
    %13 = arith.addf %9, %12 : vector<8x8xf32>
    %cst_12 = arith.constant 0.353553385 : f32
    %14 = vector.broadcast %cst_12 : f32 to vector<8x8xf32>
    %15 = arith.mulf %13, %14 : vector<8x8xf32>
    %c0_13 = arith.constant 0 : index
    %c0_14 = arith.constant 0 : index
    %c0_15 = arith.constant 0 : index
    %16 = vector.load %arg6[%c0_13, %c0_14, %c0_15] : memref<1x32x8xf32, #tpu.memory_space<vmem>>, vector<1x32x8xf32>
    %17 = vector.shape_cast %16 : vector<1x32x8xf32> to vector<32x8xf32>
    %cst_16 = arith.constant dense<0.000000e+00> : vector<8x8xf32>
    %18 = tpu.matmul %6, %17, %cst_16 {dimension_numbers = #tpu.dot_dimension_numbers<[1], [0], [0], [1], [0, 0, 1, 1], [], []>} : vector<8x32xf32>, vector<32x8xf32>, vector<8x8xf32> -> vector<8x8xf32>
    %c0_17 = arith.constant 0 : index
    %c0_18 = arith.constant 0 : index
    %c0_19 = arith.constant 0 : index
    %19 = vector.load %arg9[%c0_17, %c0_18, %c0_19] : memref<1x1x8xf32, #tpu.memory_space<vmem>>, vector<1x1x8xf32>
    %20 = vector.shape_cast %19 : vector<1x1x8xf32> to vector<1x8xf32>
    %21 = vector.broadcast %20 : vector<1x8xf32> to vector<8x8xf32>
    %22 = arith.addf %18, %21 : vector<8x8xf32>
    %c0_20 = arith.constant 0 : index
    %c0_21 = arith.constant 0 : index
    %c0_22 = arith.constant 0 : index
    %23 = vector.load %arg7[%c0_20, %c0_21, %c0_22] : memref<1x32x8xf32, #tpu.memory_space<vmem>>, vector<1x32x8xf32>
    %24 = vector.shape_cast %23 : vector<1x32x8xf32> to vector<32x8xf32>
    %cst_23 = arith.constant dense<0.000000e+00> : vector<8x8xf32>
    %25 = tpu.matmul %6, %24, %cst_23 {dimension_numbers = #tpu.dot_dimension_numbers<[1], [0], [0], [1], [0, 0, 1, 1], [], []>} : vector<8x32xf32>, vector<32x8xf32>, vector<8x8xf32> -> vector<8x8xf32>
    %c0_24 = arith.constant 0 : index
    %c0_25 = arith.constant 0 : index
    %c0_26 = arith.constant 0 : index
    %26 = vector.load %arg10[%c0_24, %c0_25, %c0_26] : memref<1x1x8xf32, #tpu.memory_space<vmem>>, vector<1x1x8xf32>
    %27 = vector.shape_cast %26 : vector<1x1x8xf32> to vector<1x8xf32>
    %28 = vector.broadcast %27 : vector<1x8xf32> to vector<8x8xf32>
    %29 = arith.addf %25, %28 : vector<8x8xf32>
    %cst_27 = arith.constant dense<0.000000e+00> : vector<8x8xf32>
    %30 = tpu.matmul %15, %22, %cst_27 {dimension_numbers = #tpu.dot_dimension_numbers<[1], [1], [0], [0], [0, 0, 1, 0], [], []>} : vector<8x8xf32>, vector<8x8xf32>, vector<8x8xf32> -> vector<8x8xf32>
    %cst_28 = arith.constant dense<0xFF800000> : vector<8xf32>
    %31 = vector.multi_reduction <maximumf>, %30, %cst_28 [1] : vector<8x8xf32> to vector<8xf32>
    %32 = vector.shape_cast %31 : vector<8xf32> to vector<8x1xf32>
    %33 = vector.broadcast %32 : vector<8x1xf32> to vector<8x8xf32>
    %34 = arith.subf %30, %33 : vector<8x8xf32>
    %35 = math.exp %34 : vector<8x8xf32>
    %cst_29 = arith.constant dense<0.000000e+00> : vector<8xf32>
    %36 = vector.multi_reduction <add>, %35, %cst_29 [1] : vector<8x8xf32> to vector<8xf32>
    %37 = vector.shape_cast %36 : vector<8xf32> to vector<8x1xf32>
    %38 = tpu.reciprocal %37 : vector<8x1xf32> -> vector<8x1xf32>
    %39 = vector.broadcast %38 : vector<8x1xf32> to vector<8x8xf32>
    %40 = arith.mulf %35, %39 : vector<8x8xf32>
    %cst_30 = arith.constant dense<0.000000e+00> : vector<8x8xf32>
    %41 = tpu.matmul %40, %29, %cst_30 {dimension_numbers = #tpu.dot_dimension_numbers<[1], [0], [0], [1], [0, 0, 1, 1], [], []>} : vector<8x8xf32>, vector<8x8xf32>, vector<8x8xf32> -> vector<8x8xf32>
    %c0_31 = arith.constant 0 : index
    %c0_32 = arith.constant 0 : index
    %42 = vector.load %arg14[%c0_31, %c0_32] : memref<8x32xf32, #tpu.memory_space<vmem>>, vector<8x32xf32>
    %c0_33 = arith.constant 0 : index
    %c0_34 = arith.constant 0 : index
    %c0_35 = arith.constant 0 : index
    %43 = vector.load %arg11[%c0_33, %c0_34, %c0_35] : memref<1x8x32xf32, #tpu.memory_space<vmem>>, vector<1x8x32xf32>
    %44 = vector.shape_cast %43 : vector<1x8x32xf32> to vector<8x32xf32>
    %cst_36 = arith.constant dense<0.000000e+00> : vector<8x32xf32>
    %45 = tpu.matmul %41, %44, %cst_36 {dimension_numbers = #tpu.dot_dimension_numbers<[1], [0], [0], [1], [0, 0, 1, 1], [], []>} : vector<8x8xf32>, vector<8x32xf32>, vector<8x32xf32> -> vector<8x32xf32>
    %46 = arith.addf %42, %45 : vector<8x32xf32>
    %c0_37 = arith.constant 0 : index
    %c0_38 = arith.constant 0 : index
    %47 = vector.load %arg14[%c0_37, %c0_38] : memref<8x32xf32, #tpu.memory_space<vmem>>, vector<8x32xf32>
    tpu.vector_store %arg14[%c0_37, %c0_38], %46 {strides = array<i32>} : memref<8x32xf32, #tpu.memory_space<vmem>>, vector<8x32xf32>,
    %c3_i32 = arith.constant 3 : i32
    %48 = arith.cmpi eq, %arg2, %c3_i32 : i32
    %49 = arith.extui %48 : i1 to i32
    %c0_i32_39 = arith.constant 0 : i32
    %50 = arith.cmpi ne, %49, %c0_i32_39 : i32
    scf.if %50 {
      %c0_40 = arith.constant 0 : index
      %c0_41 = arith.constant 0 : index
      %51 = vector.load %arg14[%c0_40, %c0_41] : memref<8x32xf32, #tpu.memory_space<vmem>>, vector<8x32xf32>
      %c0_42 = arith.constant 0 : index
      %c0_43 = arith.constant 0 : index
      %52 = vector.load %arg12[%c0_42, %c0_43] : memref<1x32xf32, #tpu.memory_space<vmem>>, vector<1x32xf32>
      %53 = vector.broadcast %52 : vector<1x32xf32> to vector<8x32xf32>
      %54 = arith.addf %51, %53 : vector<8x32xf32>
      %c0_44 = arith.constant 0 : index
      %c0_45 = arith.constant 0 : index
      %c0_46 = arith.constant 0 : index
      %55 = vector.load %arg13[%c0_44, %c0_45, %c0_46] : memref<1x8x32xf32, #tpu.memory_space<vmem>>, vector<1x8x32xf32>
      %56 = vector.shape_cast %55 : vector<1x8x32xf32> to vector<8x32xf32>
      %57 = vector.shape_cast %54 : vector<8x32xf32> to vector<1x8x32xf32>
      tpu.vector_store %arg13[%c0_44, %c0_45, %c0_46], %57 {strides = array<i32>} : memref<1x8x32xf32, #tpu.memory_space<vmem>>, vector<1x8x32xf32>,
    } else {
    }
    return
  }
  func.func @transform_0(%arg0: i32, %arg1: i32, %arg2: i32) -> (i32, i32, i32) {
    %c0_i32 = arith.constant 0 : i32
    %c0_i32_0 = arith.constant 0 : i32
    return %arg0, %arg1, %c0_i32 : i32, i32, i32
  }
  func.func @transform_1(%arg0: i32, %arg1: i32, %arg2: i32) -> (i32, i32, i32) {
    %c0_i32 = arith.constant 0 : i32
    %c0_i32_0 = arith.constant 0 : i32
    %c0_i32_1 = arith.constant 0 : i32
    return %arg0, %c0_i32, %c0_i32_0 : i32, i32, i32
  }
  func.func @transform_2(%arg0: i32, %arg1: i32, %arg2: i32) -> (i32, i32, i32) {
    %c0_i32 = arith.constant 0 : i32
    %c0_i32_0 = arith.constant 0 : i32
    %c0_i32_1 = arith.constant 0 : i32
    return %arg2, %c0_i32, %c0_i32_0 : i32, i32, i32
  }
  func.func @transform_3(%arg0: i32, %arg1: i32, %arg2: i32) -> (i32, i32, i32) {
    %c0_i32 = arith.constant 0 : i32
    %c0_i32_0 = arith.constant 0 : i32
    %c0_i32_1 = arith.constant 0 : i32
    return %arg2, %c0_i32, %c0_i32_0 : i32, i32, i32
  }
  func.func @transform_4(%arg0: i32, %arg1: i32, %arg2: i32) -> (i32, i32, i32) {
    %c0_i32 = arith.constant 0 : i32
    %c0_i32_0 = arith.constant 0 : i32
    %c0_i32_1 = arith.constant 0 : i32
    return %arg2, %c0_i32, %c0_i32_0 : i32, i32, i32
  }
  func.func @transform_5(%arg0: i32, %arg1: i32, %arg2: i32) -> (i32, i32, i32) {
    %c0_i32 = arith.constant 0 : i32
    %c0_i32_0 = arith.constant 0 : i32
    %c0_i32_1 = arith.constant 0 : i32
    return %arg2, %c0_i32, %c0_i32_0 : i32, i32, i32
  }
  func.func @transform_6(%arg0: i32, %arg1: i32, %arg2: i32) -> (i32, i32, i32) {
    %c0_i32 = arith.constant 0 : i32
    %c0_i32_0 = arith.constant 0 : i32
    %c0_i32_1 = arith.constant 0 : i32
    return %arg2, %c0_i32, %c0_i32_0 : i32, i32, i32
  }
  func.func @transform_7(%arg0: i32, %arg1: i32, %arg2: i32) -> (i32, i32, i32) {
    %c0_i32 = arith.constant 0 : i32
    %c0_i32_0 = arith.constant 0 : i32
    %c0_i32_1 = arith.constant 0 : i32
    return %arg2, %c0_i32, %c0_i32_0 : i32, i32, i32
  }
  func.func @transform_8(%arg0: i32, %arg1: i32, %arg2: i32) -> (i32, i32, i32) {
    %c0_i32 = arith.constant 0 : i32
    %c0_i32_0 = arith.constant 0 : i32
    %c0_i32_1 = arith.constant 0 : i32
    return %arg2, %c0_i32, %c0_i32_0 : i32, i32, i32
  }
  func.func @transform_9(%arg0: i32, %arg1: i32, %arg2: i32) -> (i32, i32) {
    %c0_i32 = arith.constant 0 : i32
    %c0_i32_0 = arith.constant 0 : i32
    %c0_i32_1 = arith.constant 0 : i32
    return %c0_i32, %c0_i32_0 : i32, i32
  }
  func.func @transform_10(%arg0: i32, %arg1: i32, %arg2: i32) -> (i32, i32, i32) {
    %c0_i32 = arith.constant 0 : i32
    %c0_i32_0 = arith.constant 0 : i32
    return %arg0, %arg1, %c0_i32 : i32, i32, i32
  }
}

</mosaic_0001>

<llo_original>
// kernel: tpu_custom_call.1
$region0: #{tpu_custom_call.1}
  #allocation0 [shape = 'u32[]', space=smem, size = 0x4, offset = 0x4, fixed_abs, tag = 'smem constant byte address 0x4 - core index']
  #allocation1 [shape = 'u32[72,128]{1,0:T(1,128)}', space=vmem, size = 0x9000, scoped, tag = 'internal scratch']
  #allocation2 [shape = 'f32[8,32]{1,0:T(8,128)}', space=vmem, size = 0x1000, scoped, tag = 'scratch operand']
  %s0 = inlined_call_operand.vmem [shape: f32[2,8,32], index: 0, kind: input, shape index: {}]
  %s1 = inlined_call_operand.vmem [shape: f32[2,8,32], index: 1, kind: input, shape index: {}]
  %s2 = inlined_call_operand.vmem [shape: f32[4,32,8], index: 2, kind: input, shape index: {}]
  %s3 = inlined_call_operand.vmem [shape: f32[4,32,8], index: 3, kind: input, shape index: {}]
  %s4 = inlined_call_operand.vmem [shape: f32[4,32,8], index: 4, kind: input, shape index: {}]
  %s5 = inlined_call_operand.vmem [shape: f32[4,1,8], index: 5, kind: input, shape index: {}]
  %s6 = inlined_call_operand.vmem [shape: f32[4,1,8], index: 6, kind: input, shape index: {}]
  %s7 = inlined_call_operand.vmem [shape: f32[4,1,8], index: 7, kind: input, shape index: {}]
  %s8 = inlined_call_operand.vmem [shape: f32[4,8,32], index: 8, kind: input, shape index: {}]
  %s9 = inlined_call_operand.vmem [shape: f32[1,32], index: 9, kind: input, shape index: {}]
  %s10 = inlined_call_operand.hbm [shape: f32[2,8,32], index: 10, kind: output, shape index: {}]
  %s11 = sld [smem:[#allocation0]]
  $region81: #{tpu_custom_call.1} parent=0
    _
  %s13 = ssub.s32 1, %s11
  %s14 = scalar_select 0, %s13, %s11
  $region1: #{tpu_custom_call.1} parent=0
    #allocation3 [shape = 'u8[8192]{0}', space=vmem, size = 0x2000, scoped, tag = 'output window, operand 0']
    #allocation4 [shape = 's32[2]{0}', space=sflag, size = 0x8, scoped, tag = 'scoped memory for tpu_custom_call.1']
    %15 = vsyncpa [#allocation4], 0
    %s16 = scalar_lea.sflag [#allocation4], 1
    %17 = vsyncpa %s16, 0
    loop: start=0, step=1, limit=10
    $region2: #{tpu_custom_call.1} parent=1 // loop_pre_header
      _
    $region3: #{tpu_custom_call.1} parent=1 // loop_header
      %s19 = sphi 0, %s23
      %p20 = scmp.ge.s32.totalorder %s19, 10
      %s26 = sphi 0, %s45
      %s27 = sphi 0, %s41
      %s28 = sphi 0, %s37
      %s29 = sphi 0, %s26
      %s30 = sphi 0, %s27
      %s31 = sphi 0, %s28
      %s32 = sphi 0, %s29
      %s33 = sphi 0, %s30
      %s34 = sphi 0, %s31
      %s50 = sphi 0, %s52
      %s53 = sphi 0, %s50
      %s54 = sphi 0, %s53
      %s70 = sphi 0, %s54
      %s76 = sphi 0, %s78
      %s79 = sphi 0, %s76
      %s80 = sphi 0, %s79
      %s96 = sphi 0, %s80
      %s102 = sphi 0, %s104
      %s105 = sphi 0, %s102
      %s106 = sphi 0, %s105
      %s122 = sphi 0, %s106
      %s128 = sphi 0, %s130
      %s131 = sphi 0, %s128
      %s132 = sphi 0, %s131
      %s148 = sphi 0, %s132
      %s154 = sphi 0, %s156
      %s157 = sphi 0, %s154
      %s158 = sphi 0, %s157
      %s174 = sphi 0, %s158
      %s180 = sphi 0, %s182
      %s183 = sphi 0, %s180
      %s184 = sphi 0, %s183
      %s200 = sphi 0, %s184
      %s206 = sphi 0, %s208
      %s209 = sphi 0, %s206
      %s210 = sphi 0, %s209
      %s226 = sphi 0, %s210
      %s232 = sphi 0, %s234
      %s235 = sphi 0, %s232
      %s236 = sphi 0, %s235
      %s252 = sphi 0, %s236
      %s258 = sphi 0, %s260
      %s261 = sphi 0, %s258
      %s262 = sphi 0, %s261
      %s278 = sphi 0, %s262
      %s282 = sphi 0, %s282
      %s284 = sphi 0, %s282
      %s285 = sphi 0, %s284
      %s299 = sphi 0, %s285
      %s307 = sphi 0, %s309
      %s310 = sphi 0, %s307
      %s311 = sphi 0, %s310
      %s327 = sphi 0, %s311
    $region4: #{tpu_custom_call.1} parent=1 // loop_header_branch
      %22 = sbr.rel (%p20) target = $region8
    $region5: #{tpu_custom_call.1} parent=1 // loop_body
      %s24 = ssub.s32 %s19, 1
      %s25 = ssub.s32 %s19, 2
      %s35 = sadd.s32 1, %s28
      %p36 = scmp.ge.s32.totalorder %s35, 4
      %s37 = scalar_select %p36, 0, %s35
      %s38 = sadd.s32 1, %s27
      %s39 = scalar_select %p36, %s38, %s27
      %p40 = scmp.ge.s32.totalorder %s39, 1
      %s41 = scalar_select %p40, 0, %s39
      %s42 = sadd.s32 1, %s26
      %s43 = scalar_select %p40, %s42, %s26
      %p44 = scmp.ge.s32.totalorder %s43, 2
      %s45 = scalar_select %p44, 0, %s43
      %s46 = ssub.s32 %s26, %s45
      %s47 = ssub.s32 %s27, %s41
      %s48 = sor.u32 %s46, %s47
      %p49 = scmp.eq.s32.totalorder %s48, 0
      %s51 = sadd.s32 %s50, 1
      %s52 = scalar_select %p49, %s50, %s51
      %p55 = pneg %p49
      %p56 = scmp.eq.s32.totalorder %s19, 7
      %p57 = por %p55, %p56
      %p58 = scmp.ne.s32.totalorder %s50, %s53
      %p59 = scmp.eq.s32.totalorder %s19, 0
      %p60 = por %p58, %p59
      %p61 = scmp.ne.s32.totalorder %s50, %s53
      %p62 = scmp.eq.s32.totalorder %s24, 7
      %p63 = por %p61, %p62
      %p64 = scmp.ne.s32.totalorder %s53, %s54
      %p65 = scmp.eq.s32.totalorder %s24, 0
      %p66 = por %p64, %p65
      %p67 = scmp.ne.s32.totalorder %s53, %s54
      %p68 = scmp.eq.s32.totalorder %s25, 7
      %p69 = por %p67, %p68
      %p71 = scmp.ne.s32.totalorder %s54, %s70
      %p72 = scmp.eq.s32.totalorder %s25, 0
      %p73 = por %p71, %p72
      %s74 = ssub.s32 %s26, %s45
      %p75 = scmp.eq.s32.totalorder %s74, 0
      %s77 = sadd.s32 %s76, 1
      %s78 = scalar_select %p75, %s76, %s77
      %p81 = pneg %p75
      %p82 = scmp.eq.s32.totalorder %s19, 7
      %p83 = por %p81, %p82
      %p84 = scmp.ne.s32.totalorder %s76, %s79
      %p85 = scmp.eq.s32.totalorder %s19, 0
      %p86 = por %p84, %p85
      %p87 = scmp.ne.s32.totalorder %s76, %s79
      %p88 = scmp.eq.s32.totalorder %s24, 7
      %p89 = por %p87, %p88
      %p90 = scmp.ne.s32.totalorder %s79, %s80
      %p91 = scmp.eq.s32.totalorder %s24, 0
      %p92 = por %p90, %p91
      %p93 = scmp.ne.s32.totalorder %s79, %s80
      %p94 = scmp.eq.s32.totalorder %s25, 7
      %p95 = por %p93, %p94
      %p97 = scmp.ne.s32.totalorder %s80, %s96
      %p98 = scmp.eq.s32.totalorder %s25, 0
      %p99 = por %p97, %p98
      %s100 = ssub.s32 %s28, %s37
      %p101 = scmp.eq.s32.totalorder %s100, 0
      %s103 = sadd.s32 %s102, 1
      %s104 = scalar_select %p101, %s102, %s103
      %p107 = pneg %p101
      %p108 = scmp.eq.s32.totalorder %s19, 7
      %p109 = por %p107, %p108
      %p110 = scmp.ne.s32.totalorder %s102, %s105
      %p111 = scmp.eq.s32.totalorder %s19, 0
      %p112 = por %p110, %p111
      %p113 = scmp.ne.s32.totalorder %s102, %s105
      %p114 = scmp.eq.s32.totalorder %s24, 7
      %p115 = por %p113, %p114
      %p116 = scmp.ne.s32.totalorder %s105, %s106
      %p117 = scmp.eq.s32.totalorder %s24, 0
      %p118 = por %p116, %p117
      %p119 = scmp.ne.s32.totalorder %s105, %s106
      %p120 = scmp.eq.s32.totalorder %s25, 7
      %p121 = por %p119, %p120
      %p123 = scmp.ne.s32.totalorder %s106, %s122
      %p124 = scmp.eq.s32.totalorder %s25, 0
      %p125 = por %p123, %p124
      %s126 = ssub.s32 %s28, %s37
      %p127 = scmp.eq.s32.totalorder %s126, 0
      %s129 = sadd.s32 %s128, 1
      %s130 = scalar_select %p127, %s128, %s129
      %p133 = pneg %p127
      %p134 = scmp.eq.s32.totalorder %s19, 7
      %p135 = por %p133, %p134
      %p136 = scmp.ne.s32.totalorder %s128, %s131
      %p137 = scmp.eq.s32.totalorder %s19, 0
      %p138 = por %p136, %p137
      %p139 = scmp.ne.s32.totalorder %s128, %s131
      %p140 = scmp.eq.s32.totalorder %s24, 7
      %p141 = por %p139, %p140
      %p142 = scmp.ne.s32.totalorder %s131, %s132
      %p143 = scmp.eq.s32.totalorder %s24, 0
      %p144 = por %p142, %p143
      %p145 = scmp.ne.s32.totalorder %s131, %s132
      %p146 = scmp.eq.s32.totalorder %s25, 7
      %p147 = por %p145, %p146
      %p149 = scmp.ne.s32.totalorder %s132, %s148
      %p150 = scmp.eq.s32.totalorder %s25, 0
      %p151 = por %p149, %p150
      %s152 = ssub.s32 %s28, %s37
      %p153 = scmp.eq.s32.totalorder %s152, 0
      %s155 = sadd.s32 %s154, 1
      %s156 = scalar_select %p153, %s154, %s155
      %p159 = pneg %p153
      %p160 = scmp.eq.s32.totalorder %s19, 7
      %p161 = por %p159, %p160
      %p162 = scmp.ne.s32.totalorder %s154, %s157
      %p163 = scmp.eq.s32.totalorder %s19, 0
      %p164 = por %p162, %p163
      %p165 = scmp.ne.s32.totalorder %s154, %s157
      %p166 = scmp.eq.s32.totalorder %s24, 7
      %p167 = por %p165, %p166
      %p168 = scmp.ne.s32.totalorder %s157, %s158
      %p169 = scmp.eq.s32.totalorder %s24, 0
      %p170 = por %p168, %p169
      %p171 = scmp.ne.s32.totalorder %s157, %s158
      %p172 = scmp.eq.s32.totalorder %s25, 7
      %p173 = por %p171, %p172
      %p175 = scmp.ne.s32.totalorder %s158, %s174
      %p176 = scmp.eq.s32.totalorder %s25, 0
      %p177 = por %p175, %p176
      %s178 = ssub.s32 %s28, %s37
      %p179 = scmp.eq.s32.totalorder %s178, 0
      %s181 = sadd.s32 %s180, 1
      %s182 = scalar_select %p179, %s180, %s181
      %p185 = pneg %p179
      %p186 = scmp.eq.s32.totalorder %s19, 7
      %p187 = por %p185, %p186
      %p188 = scmp.ne.s32.totalorder %s180, %s183
      %p189 = scmp.eq.s32.totalorder %s19, 0
      %p190 = por %p188, %p189
      %p191 = scmp.ne.s32.totalorder %s180, %s183
      %p192 = scmp.eq.s32.totalorder %s24, 7
      %p193 = por %p191, %p192
      %p194 = scmp.ne.s32.totalorder %s183, %s184
      %p195 = scmp.eq.s32.totalorder %s24, 0
      %p196 = por %p194, %p195
      %p197 = scmp.ne.s32.totalorder %s183, %s184
      %p198 = scmp.eq.s32.totalorder %s25, 7
      %p199 = por %p197, %p198
      %p201 = scmp.ne.s32.totalorder %s184, %s200
      %p202 = scmp.eq.s32.totalorder %s25, 0
      %p203 = por %p201, %p202
      %s204 = ssub.s32 %s28, %s37
      %p205 = scmp.eq.s32.totalorder %s204, 0
      %s207 = sadd.s32 %s206, 1
      %s208 = scalar_select %p205, %s206, %s207
      %p211 = pneg %p205
      %p212 = scmp.eq.s32.totalorder %s19, 7
      %p213 = por %p211, %p212
      %p214 = scmp.ne.s32.totalorder %s206, %s209
      %p215 = scmp.eq.s32.totalorder %s19, 0
      %p216 = por %p214, %p215
      %p217 = scmp.ne.s32.totalorder %s206, %s209
      %p218 = scmp.eq.s32.totalorder %s24, 7
      %p219 = por %p217, %p218
      %p220 = scmp.ne.s32.totalorder %s209, %s210
      %p221 = scmp.eq.s32.totalorder %s24, 0
      %p222 = por %p220, %p221
      %p223 = scmp.ne.s32.totalorder %s209, %s210
      %p224 = scmp.eq.s32.totalorder %s25, 7
      %p225 = por %p223, %p224
      %p227 = scmp.ne.s32.totalorder %s210, %s226
      %p228 = scmp.eq.s32.totalorder %s25, 0
      %p229 = por %p227, %p228
      %s230 = ssub.s32 %s28, %s37
      %p231 = scmp.eq.s32.totalorder %s230, 0
      %s233 = sadd.s32 %s232, 1
      %s234 = scalar_select %p231, %s232, %s233
      %p237 = pneg %p231
      %p238 = scmp.eq.s32.totalorder %s19, 7
      %p239 = por %p237, %p238
      %p240 = scmp.ne.s32.totalorder %s232, %s235
      %p241 = scmp.eq.s32.totalorder %s19, 0
      %p242 = por %p240, %p241
      %p243 = scmp.ne.s32.totalorder %s232, %s235
      %p244 = scmp.eq.s32.totalorder %s24, 7
      %p245 = por %p243, %p244
      %p246 = scmp.ne.s32.totalorder %s235, %s236
      %p247 = scmp.eq.s32.totalorder %s24, 0
      %p248 = por %p246, %p247
      %p249 = scmp.ne.s32.totalorder %s235, %s236
      %p250 = scmp.eq.s32.totalorder %s25, 7
      %p251 = por %p249, %p250
      %p253 = scmp.ne.s32.totalorder %s236, %s252
      %p254 = scmp.eq.s32.totalorder %s25, 0
      %p255 = por %p253, %p254
      %s256 = ssub.s32 %s28, %s37
      %p257 = scmp.eq.s32.totalorder %s256, 0
      %s259 = sadd.s32 %s258, 1
      %s260 = scalar_select %p257, %s258, %s259
      %p263 = pneg %p257
      %p264 = scmp.eq.s32.totalorder %s19, 7
      %p265 = por %p263, %p264
      %p266 = scmp.ne.s32.totalorder %s258, %s261
      %p267 = scmp.eq.s32.totalorder %s19, 0
      %p268 = por %p266, %p267
      %p269 = scmp.ne.s32.totalorder %s258, %s261
      %p270 = scmp.eq.s32.totalorder %s24, 7
      %p271 = por %p269, %p270
      %p272 = scmp.ne.s32.totalorder %s261, %s262
      %p273 = scmp.eq.s32.totalorder %s24, 0
      %p274 = por %p272, %p273
      %p275 = scmp.ne.s32.totalorder %s261, %s262
      %p276 = scmp.eq.s32.totalorder %s25, 7
      %p277 = por %p275, %p276
      %p279 = scmp.ne.s32.totalorder %s262, %s278
      %p280 = scmp.eq.s32.totalorder %s25, 0
      %p281 = por %p279, %p280
      %s283 = sadd.s32 %s282, 1
      %p286 = scmp.eq.s32.totalorder %s19, 7
      %p287 = scmp.ne.s32.totalorder %s282, %s284
      %p288 = scmp.eq.s32.totalorder %s19, 0
      %p289 = por %p287, %p288
      %p290 = scmp.ne.s32.totalorder %s282, %s284
      %p291 = scmp.eq.s32.totalorder %s24, 7
      %p292 = por %p290, %p291
      %p293 = scmp.ne.s32.totalorder %s284, %s285
      %p294 = scmp.eq.s32.totalorder %s24, 0
      %p295 = por %p293, %p294
      %p296 = scmp.ne.s32.totalorder %s284, %s285
      %p297 = scmp.eq.s32.totalorder %s25, 7
      %p298 = por %p296, %p297
      %p300 = scmp.ne.s32.totalorder %s285, %s299
      %p301 = scmp.eq.s32.totalorder %s25, 0
      %p302 = por %p300, %p301
      %s303 = ssub.s32 %s26, %s45
      %s304 = ssub.s32 %s27, %s41
      %s305 = sor.u32 %s303, %s304
      %p306 = scmp.eq.s32.totalorder %s305, 0
      %s308 = sadd.s32 %s307, 1
      %s309 = scalar_select %p306, %s307, %s308
      %p312 = pneg %p306
      %p313 = scmp.eq.s32.totalorder %s19, 7
      %p314 = por %p312, %p313
      %p315 = scmp.ne.s32.totalorder %s307, %s310
      %p316 = scmp.eq.s32.totalorder %s19, 0
      %p317 = por %p315, %p316
      %p318 = scmp.ne.s32.totalorder %s307, %s310
      %p319 = scmp.eq.s32.totalorder %s24, 7
      %p320 = por %p318, %p319
      %p321 = scmp.ne.s32.totalorder %s310, %s311
      %p322 = scmp.eq.s32.totalorder %s24, 0
      %p323 = por %p321, %p322
      %p324 = scmp.ne.s32.totalorder %s310, %s311
      %p325 = scmp.eq.s32.totalorder %s25, 7
      %p326 = por %p324, %p325
      %p328 = scmp.ne.s32.totalorder %s311, %s327
      %p329 = scmp.eq.s32.totalorder %s25, 0
      %p330 = por %p328, %p329
      %p331 = scmp.le.s32.totalorder 1, %s19
      %p332 = scmp.lt.s32.totalorder %s19, 9
      %p333 = pnand %p331, %p332
      %p334 = pneg %p333
      // Predicated region
      $region9: #{tpu_custom_call.1} parent=5 // pred_check
        _
      $region10: #{tpu_custom_call.1} parent=5 // pred_check_branch
        %336 = sbr.rel (%p333) target = $region12
      $region11: #{tpu_custom_call.1} parent=5 // pred_region
        %s337 = ssub.s32 %s19, 1
        // Predicated region
        $region13: #{tpu_custom_call.1} parent=11 // pred_check
          %p338 = pneg %p295
        $region14: #{tpu_custom_call.1} parent=11 // pred_check_branch
          %340 = sbr.rel (%p338) target = $region16
        $region15: #{tpu_custom_call.1} parent=11 // pred_region
          _
        $region16: #{tpu_custom_call.1} parent=11 // pred_fallthru
          _
      $region12: #{tpu_custom_call.1} parent=5 // pred_fallthru
        _
      %p341 = scmp.lt.s32.totalorder %s19, 8
      // Predicated region
      $region17: #{tpu_custom_call.1} parent=5 // pred_check
        %p342 = pneg %p341
      $region18: #{tpu_custom_call.1} parent=5 // pred_check_branch
        %344 = sbr.rel (%p342) target = $region20
      $region19: #{tpu_custom_call.1} parent=5 // pred_region
        // Predicated region
        $region21: #{tpu_custom_call.1} parent=19 // pred_check
          %p345 = pneg %p60
        $region22: #{tpu_custom_call.1} parent=19 // pred_check_branch
          %347 = sbr.rel (%p345) target = $region24
        $region23: #{tpu_custom_call.1} parent=19 // pred_region
          %p348 = scmp.lt.s32.totalorder %s26, 1
          %s349 = scalar_select %p348, %s26, 1
          %p350 = scmp.lt.s32.totalorder %s27, 0
          %s351 = scalar_select %p350, %s27, 0
          %s352 = sadd.s32 %s351, %s349
          %s353 = smul.addr %s352, 8
          %s354 = scalar_lea.vmem %s0, %s353
        $region24: #{tpu_custom_call.1} parent=19 // pred_fallthru
          _
        // Predicated region
        $region25: #{tpu_custom_call.1} parent=19 // pred_check
          %p355 = pneg %p86
        $region26: #{tpu_custom_call.1} parent=19 // pred_check_branch
          %357 = sbr.rel (%p355) target = $region28
        $region27: #{tpu_custom_call.1} parent=19 // pred_region
          %p358 = scmp.lt.s32.totalorder %s26, 1
          %s359 = scalar_select %p358, %s26, 1
          %s360 = smul.addr %s359, 8
          %s361 = scalar_lea.vmem %s1, %s360
        $region28: #{tpu_custom_call.1} parent=19 // pred_fallthru
          _
        // Predicated region
        $region29: #{tpu_custom_call.1} parent=19 // pred_check
          %p362 = pneg %p112
        $region30: #{tpu_custom_call.1} parent=19 // pred_check_branch
          %364 = sbr.rel (%p362) target = $region32
        $region31: #{tpu_custom_call.1} parent=19 // pred_region
          %p365 = scmp.lt.s32.totalorder %s28, 3
          %s366 = scalar_select %p365, %s28, 3
          %s367 = smul.addr %s366, 4
          %s368 = smul.addr %s367, 8
          %s369 = scalar_lea.vmem %s2, %s368
        $region32: #{tpu_custom_call.1} parent=19 // pred_fallthru
          _
        // Predicated region
        $region33: #{tpu_custom_call.1} parent=19 // pred_check
          %p370 = pneg %p138
        $region34: #{tpu_custom_call.1} parent=19 // pred_check_branch
          %372 = sbr.rel (%p370) target = $region36
        $region35: #{tpu_custom_call.1} parent=19 // pred_region
          %p373 = scmp.lt.s32.totalorder %s28, 3
          %s374 = scalar_select %p373, %s28, 3
          %s375 = smul.addr %s374, 4
          %s376 = smul.addr %s375, 8
          %s377 = scalar_lea.vmem %s3, %s376
        $region36: #{tpu_custom_call.1} parent=19 // pred_fallthru
          _
        // Predicated region
        $region37: #{tpu_custom_call.1} parent=19 // pred_check
          %p378 = pneg %p164
        $region38: #{tpu_custom_call.1} parent=19 // pred_check_branch
          %380 = sbr.rel (%p378) target = $region40
        $region39: #{tpu_custom_call.1} parent=19 // pred_region
          %p381 = scmp.lt.s32.totalorder %s28, 3
          %s382 = scalar_select %p381, %s28, 3
          %s383 = smul.addr %s382, 4
          %s384 = smul.addr %s383, 8
          %s385 = scalar_lea.vmem %s4, %s384
        $region40: #{tpu_custom_call.1} parent=19 // pred_fallthru
          _
        // Predicated region
        $region41: #{tpu_custom_call.1} parent=19 // pred_check
          %p386 = pneg %p190
        $region42: #{tpu_custom_call.1} parent=19 // pred_check_branch
          %388 = sbr.rel (%p386) target = $region44
        $region43: #{tpu_custom_call.1} parent=19 // pred_region
          %p389 = scmp.lt.s32.totalorder %s28, 3
          %s390 = scalar_select %p389, %s28, 3
          %s391 = scalar_lea.vmem %s5, %s390
        $region44: #{tpu_custom_call.1} parent=19 // pred_fallthru
          _
        // Predicated region
        $region45: #{tpu_custom_call.1} parent=19 // pred_check
          %p392 = pneg %p216
        $region46: #{tpu_custom_call.1} parent=19 // pred_check_branch
          %394 = sbr.rel (%p392) target = $region48
        $region47: #{tpu_custom_call.1} parent=19 // pred_region
          %p395 = scmp.lt.s32.totalorder %s28, 3
          %s396 = scalar_select %p395, %s28, 3
          %s397 = scalar_lea.vmem %s6, %s396
        $region48: #{tpu_custom_call.1} parent=19 // pred_fallthru
          _
        // Predicated region
        $region49: #{tpu_custom_call.1} parent=19 // pred_check
          %p398 = pneg %p242
        $region50: #{tpu_custom_call.1} parent=19 // pred_check_branch
          %400 = sbr.rel (%p398) target = $region52
        $region51: #{tpu_custom_call.1} parent=19 // pred_region
          %p401 = scmp.lt.s32.totalorder %s28, 3
          %s402 = scalar_select %p401, %s28, 3
          %s403 = scalar_lea.vmem %s7, %s402
        $region52: #{tpu_custom_call.1} parent=19 // pred_fallthru
          _
        // Predicated region
        $region53: #{tpu_custom_call.1} parent=19 // pred_check
          %p404 = pneg %p268
        $region54: #{tpu_custom_call.1} parent=19 // pred_check_branch
          %406 = sbr.rel (%p404) target = $region56
        $region55: #{tpu_custom_call.1} parent=19 // pred_region
          %p407 = scmp.lt.s32.totalorder %s28, 3
          %s408 = scalar_select %p407, %s28, 3
          %s409 = smul.addr %s408, 8
          %s410 = scalar_lea.vmem %s8, %s409
        $region56: #{tpu_custom_call.1} parent=19 // pred_fallthru
          _
      $region20: #{tpu_custom_call.1} parent=5 // pred_fallthru
        _
      %p411 = scmp.le.s32.totalorder 1, %s19
      %p412 = scmp.lt.s32.totalorder %s19, 9
      %p413 = pnand %p411, %p412
      %p414 = pneg %p413
      // Predicated region
      $region57: #{tpu_custom_call.1} parent=5 // pred_check
        _
      $region58: #{tpu_custom_call.1} parent=5 // pred_check_branch
        %416 = sbr.rel (%p413) target = $region60
      $region59: #{tpu_custom_call.1} parent=5 // pred_region
        %s417 = ssub.s32 %s19, 1
        %p418 = scmp.lt.s32.totalorder %s29, 1
        %s419 = scalar_select %p418, %s29, 1
        %p420 = scmp.lt.s32.totalorder %s30, 0
        %s421 = scalar_select %p420, %s30, 0
        %s422 = sadd.s32 %s421, %s419
        %s423 = smul.addr %s422, 8
        %s424 = scalar_lea.vmem %s0, %s423
        %p425 = pneg %p66
        %p426 = pneg %p63
        %p427 = scmp.lt.s32.totalorder %s29, 1
        %s428 = scalar_select %p427, %s29, 1
        %s429 = smul.addr %s428, 8
        %s430 = scalar_lea.vmem %s1, %s429
        %p431 = pneg %p92
        %p432 = pneg %p89
        %p433 = scmp.lt.s32.totalorder %s31, 3
        %s434 = scalar_select %p433, %s31, 3
        %s435 = smul.addr %s434, 4
        %s436 = smul.addr %s435, 8
        %s437 = scalar_lea.vmem %s2, %s436
        %p438 = pneg %p118
        %p439 = pneg %p115
        %p440 = scmp.lt.s32.totalorder %s31, 3
        %s441 = scalar_select %p440, %s31, 3
        %s442 = smul.addr %s441, 4
        %s443 = smul.addr %s442, 8
        %s444 = scalar_lea.vmem %s3, %s443
        %p445 = pneg %p144
        %p446 = pneg %p141
        %p447 = scmp.lt.s32.totalorder %s31, 3
        %s448 = scalar_select %p447, %s31, 3
        %s449 = smul.addr %s448, 4
        %s450 = smul.addr %s449, 8
        %s451 = scalar_lea.vmem %s4, %s450
        %p452 = pneg %p170
        %p453 = pneg %p167
        %p454 = scmp.lt.s32.totalorder %s31, 3
        %s455 = scalar_select %p454, %s31, 3
        %s456 = scalar_lea.vmem %s5, %s455
        %p457 = pneg %p196
        %p458 = pneg %p193
        %p459 = scmp.lt.s32.totalorder %s31, 3
        %s460 = scalar_select %p459, %s31, 3
        %s461 = scalar_lea.vmem %s6, %s460
        %p462 = pneg %p222
        %p463 = pneg %p219
        %p464 = scmp.lt.s32.totalorder %s31, 3
        %s465 = scalar_select %p464, %s31, 3
        %s466 = scalar_lea.vmem %s7, %s465
        %p467 = pneg %p248
        %p468 = pneg %p245
        %p469 = scmp.lt.s32.totalorder %s31, 3
        %s470 = scalar_select %p469, %s31, 3
        %s471 = smul.addr %s470, 8
        %s472 = scalar_lea.vmem %s8, %s471
        %p473 = pneg %p274
        %p474 = pneg %p271
        %p475 = pneg %p295
        %p476 = pneg %p292
        %p477 = pneg %p323
        %p478 = pneg %p320
        %s479 = sand.u32 %s310, 1
        %s480 = scalar_lea.sflag [#allocation4], %s479
        %s481 = sand.u32 %s310, 1
        %s482 = smul.addr %s481, 8
        %s483 = scalar_lea.vmem [#allocation3], %s482
        %p484 = scmp.lt.s32.totalorder %s29, 1
        %s485 = scalar_select %p484, %s29, 1
        %p486 = scmp.lt.s32.totalorder %s30, 0
        %s487 = scalar_select %p486, %s30, 0
        %s488 = sadd.s32 %s487, %s485
        %s489 = smul.addr %s488, 8
        %s490 = scalar_lea.vmem %s0, %s489
        %p491 = scmp.lt.s32.totalorder %s29, 1
        %s492 = scalar_select %p491, %s29, 1
        %s493 = smul.addr %s492, 8
        %s494 = scalar_lea.vmem %s1, %s493
        %p495 = scmp.lt.s32.totalorder %s31, 3
        %s496 = scalar_select %p495, %s31, 3
        %s497 = smul.addr %s496, 4
        %s498 = smul.addr %s497, 8
        %s499 = scalar_lea.vmem %s2, %s498
        %p500 = scmp.lt.s32.totalorder %s31, 3
        %s501 = scalar_select %p500, %s31, 3
        %s502 = smul.addr %s501, 4
        %s503 = smul.addr %s502, 8
        %s504 = scalar_lea.vmem %s3, %s503
        %p505 = scmp.lt.s32.totalorder %s31, 3
        %s506 = scalar_select %p505, %s31, 3
        %s507 = smul.addr %s506, 4
        %s508 = smul.addr %s507, 8
        %s509 = scalar_lea.vmem %s4, %s508
        %p510 = scmp.lt.s32.totalorder %s31, 3
        %s511 = scalar_select %p510, %s31, 3
        %s512 = scalar_lea.vmem %s5, %s511
        %p513 = scmp.lt.s32.totalorder %s31, 3
        %s514 = scalar_select %p513, %s31, 3
        %s515 = scalar_lea.vmem %s6, %s514
        %p516 = scmp.lt.s32.totalorder %s31, 3
        %s517 = scalar_select %p516, %s31, 3
        %s518 = scalar_lea.vmem %s7, %s517
        %p519 = scmp.lt.s32.totalorder %s31, 3
        %s520 = scalar_select %p519, %s31, 3
        %s521 = smul.addr %s520, 8
        %s522 = scalar_lea.vmem %s8, %s521
        %p523 = scmp.eq.s32.totalorder %s31, 0
        // Predicated region
        $region61: #{tpu_custom_call.1} parent=59 // pred_check
          %p524 = pneg %p523
        $region62: #{tpu_custom_call.1} parent=59 // pred_check_branch
          %526 = sbr.rel (%p524) target = $region64
        $region63: #{tpu_custom_call.1} parent=59 // pred_region
          %vm527 = vcmask 261120
          %528 = vst.msk [vmem:[#allocation2] sm:$0xff] %vm527, 0.0
        $region64: #{tpu_custom_call.1} parent=59 // pred_fallthru
          _
        %v529 = vld [vmem:[%s490] sm:$0xff]
        %v530 = vld [vmem:[%s494] sm:$0xff]
        %v531 = vld [vmem:[%s499] sm:$0xff]
        %v532 = vld [vmem:[%s499 + $0x8] sm:$0xff]
        %v533 = vld [vmem:[%s499 + $0x10] sm:$0xff]
        %v534 = vld [vmem:[%s499 + $0x18] sm:$0xff]
        %v535 = vld [vmem:[%s512] sm:$0x1]
        %v537 = vperm.slane %v535, 0
        %vm539 = vcmask 261120
        %v541 = vsel %vm539, %v529, 0
        %543 = vmatpush.msra.mxu0 0.0
        %544 = vmatpush.msra.mxu0 0.0
        %545 = vmatpush.msra.mxu0 0.0
        %546 = vmatpush.msra.mxu0 0.0
        %547 = vmatpush.msra.mxu0 0.0
        %548 = vmatpush.msra.mxu0 0.0
        %549 = vmatpush.msra.mxu0 0.0
        %550 = vmatpush.msra.mxu0 0.0
        %551 = vmatpush.msra.mxu0 0.0
        %552 = vmatpush.msra.mxu0 0.0
        %553 = vmatpush.msra.mxu0 0.0
        %554 = vmatpush.msra.mxu0 0.0
        %555 = vmatpush.msra.mxu0 %v534
        %556 = vmatpush.msra.mxu0 %v533
        %557 = vmatpush.msra.mxu0 %v532
        %558 = vmatpush.msra.mxu0 %v531
        %559 = vmatmul.f32.gmra.mxu0 %v541
        %v560 = vpop.f32.mrf.mxu0
        %v561 = vadd.f32 %v537, %v560
        %562 = vdwg.mxu0
        %v563 = vmul.f32 %v561, 0.35355338
        %v564 = vld [vmem:[%s504] sm:$0xff]
        %v565 = vld [vmem:[%s504 + $0x8] sm:$0xff]
        %v566 = vld [vmem:[%s504 + $0x10] sm:$0xff]
        %v567 = vld [vmem:[%s504 + $0x18] sm:$0xff]
        %v568 = vld [vmem:[%s515] sm:$0x1]
        %v570 = vperm.slane %v568, 0
        %v573 = vsel %vm539, %v530, 0
        %575 = vmatpush.msra.mxu0 0.0
        %576 = vmatpush.msra.mxu0 0.0
        %577 = vmatpush.msra.mxu0 0.0
        %578 = vmatpush.msra.mxu0 0.0
        %579 = vmatpush.msra.mxu0 0.0
        %580 = vmatpush.msra.mxu0 0.0
        %581 = vmatpush.msra.mxu0 0.0
        %582 = vmatpush.msra.mxu0 0.0
        %583 = vmatpush.msra.mxu0 0.0
        %584 = vmatpush.msra.mxu0 0.0
        %585 = vmatpush.msra.mxu0 0.0
        %586 = vmatpush.msra.mxu0 0.0
        %587 = vmatpush.msra.mxu0 %v567
        %588 = vmatpush.msra.mxu0 %v566
        %589 = vmatpush.msra.mxu0 %v565
        %590 = vmatpush.msra.mxu0 %v564
        %591 = vmatmul.f32.gmra.mxu0 %v573
        %v592 = vpop.f32.mrf.mxu0
        %v593 = vadd.f32 %v570, %v592
        %594 = vdwg.mxu0
        %v595 = vld [vmem:[%s509] sm:$0xff]
        %v596 = vld [vmem:[%s509 + $0x8] sm:$0xff]
        %v597 = vld [vmem:[%s509 + $0x10] sm:$0xff]
        %v598 = vld [vmem:[%s509 + $0x18] sm:$0xff]
        %v599 = vld [vmem:[%s518] sm:$0x1]
        %v601 = vperm.slane %v599, 0
        %603 = vmatpush.msra.mxu0 0.0
        %604 = vmatpush.msra.mxu0 0.0
        %605 = vmatpush.msra.mxu0 0.0
        %606 = vmatpush.msra.mxu0 0.0
        %607 = vmatpush.msra.mxu0 0.0
        %608 = vmatpush.msra.mxu0 0.0
        %609 = vmatpush.msra.mxu0 0.0
        %610 = vmatpush.msra.mxu0 0.0
        %611 = vmatpush.msra.mxu0 0.0
        %612 = vmatpush.msra.mxu0 0.0
        %613 = vmatpush.msra.mxu0 0.0
        %614 = vmatpush.msra.mxu0 0.0
        %615 = vmatpush.msra.mxu0 %v598
        %616 = vmatpush.msra.mxu0 %v597
        %617 = vmatpush.msra.mxu0 %v596
        %618 = vmatpush.msra.mxu0 %v595
        %619 = vmatmul.f32.gmra.mxu0 %v573
        %v620 = vpop.f32.mrf.mxu0
        %v621 = vadd.f32 %v601, %v620
        %622 = vdwg.mxu0
        %vm623 = vcmask 64512
        %v625 = vsel %vm623, %v563, 0
        %v628 = vsel %vm623, %v593, 0
        %630 = vmatpush.xpose.msra.mxu0 0.0
        %631 = vmatpush.xpose.msra.mxu0 0.0
        %632 = vmatpush.xpose.msra.mxu0 0.0
        %633 = vmatpush.xpose.msra.mxu0 0.0
        %634 = vmatpush.xpose.msra.mxu0 0.0
        %635 = vmatpush.xpose.msra.mxu0 0.0
        %636 = vmatpush.xpose.msra.mxu0 0.0
        %637 = vmatpush.xpose.msra.mxu0 0.0
        %638 = vmatpush.xpose.msra.mxu0 0.0
        %639 = vmatpush.xpose.msra.mxu0 0.0
        %640 = vmatpush.xpose.msra.mxu0 0.0
        %641 = vmatpush.xpose.msra.mxu0 0.0
        %642 = vmatpush.xpose.msra.mxu0 0.0
        %643 = vmatpush.xpose.msra.mxu0 0.0
        %644 = vmatpush.xpose.msra.mxu0 0.0
        %645 = vmatpush.xpose.msra.mxu0 %v628
        %646 = vmatmul.f32.gmra.mxu0 %v625
        %v647 = vpop.f32.mrf.mxu0
        %v648 = vadd.f32 0.0, %v647
        %649 = vdwg.mxu0
        %v650 = vsel %vm623, %v648, -inf
        %651 = vmax.xlane.f32.xlu0 %v650
        %v652 = vpop.xlane.xlu0 %651
        %v653 = vsub.f32 %v648, %v652
        %v654 = vmul.f32 %v653, 1.442695
        %v655 = vpow.pop %v654
        %v656 = vsel %vm623, %v655, 0.0
        %657 = vadd.xlane.f32.xlu0 %v656
        %v658 = vpop.xlane.xlu0 %657
        %v659 = vrcp.pop %v658
        %v660 = vmul.f32 %v658, %v659
        %v661 = vsub.f32 1.0, %v660
        %v662 = vmul.f32 %v659, %v661
        %v663 = vadd.f32 %v659, %v662
        %vm664 = vweird.f32 %v658
        %vm665 = vweird.f32 %v659
        %vm666 = vmor %vm664, %vm665
        %v667 = vsel %vm666, %v659, %v663
        %v668 = vand.u32 2147483647, %v658
        %vm669 = vcmp.eq.f32.partialorder %v668, 8.507059e+37
        %v670 = vand.u32 %v658, 2147483648
        %v671 = vor.u32 1.1754944e-38, %v670
        %v672 = vsel %vm669, %v671, %v667
        %v673 = vmul.f32 %v655, %v672
        %v675 = vsel %vm623, %v673, 0
        %677 = vmatpush.msra.mxu0 0.0
        %678 = vmatpush.msra.mxu0 0.0
        %679 = vmatpush.msra.mxu0 0.0
        %680 = vmatpush.msra.mxu0 0.0
        %681 = vmatpush.msra.mxu0 0.0
        %682 = vmatpush.msra.mxu0 0.0
        %683 = vmatpush.msra.mxu0 0.0
        %684 = vmatpush.msra.mxu0 0.0
        %685 = vmatpush.msra.mxu0 0.0
        %686 = vmatpush.msra.mxu0 0.0
        %687 = vmatpush.msra.mxu0 0.0
        %688 = vmatpush.msra.mxu0 0.0
        %689 = vmatpush.msra.mxu0 0.0
        %690 = vmatpush.msra.mxu0 0.0
        %691 = vmatpush.msra.mxu0 0.0
        %692 = vmatpush.msra.mxu0 %v621
        %693 = vmatmul.f32.gmra.mxu0 %v675
        %v694 = vpop.f32.mrf.mxu0
        %v695 = vadd.f32 0.0, %v694
        %696 = vdwg.mxu0
        %v697 = vld [vmem:[#allocation2] sm:$0xff]
        %v698 = vld [vmem:[%s522] sm:$0xff]
        %v700 = vsel %vm623, %v695, 0
        %702 = vmatpush.msra.mxu0 0.0
        %703 = vmatpush.msra.mxu0 0.0
        %704 = vmatpush.msra.mxu0 0.0
        %705 = vmatpush.msra.mxu0 0.0
        %706 = vmatpush.msra.mxu0 0.0
        %707 = vmatpush.msra.mxu0 0.0
        %708 = vmatpush.msra.mxu0 0.0
        %709 = vmatpush.msra.mxu0 0.0
        %710 = vmatpush.msra.mxu0 0.0
        %711 = vmatpush.msra.mxu0 0.0
        %712 = vmatpush.msra.mxu0 0.0
        %713 = vmatpush.msra.mxu0 0.0
        %714 = vmatpush.msra.mxu0 0.0
        %715 = vmatpush.msra.mxu0 0.0
        %716 = vmatpush.msra.mxu0 0.0
        %717 = vmatpush.msra.mxu0 %v698
        %718 = vmatmul.f32.gmra.mxu0 %v700
        %v719 = vpop.f32.mrf.mxu0
        %v720 = vadd.f32 0.0, %v719
        %721 = vdwg.mxu0
        %v722 = vadd.f32 %v697, %v720
        %723 = vst.msk [vmem:[#allocation2] sm:$0xff] %vm539, %v722
        %p724 = scmp.eq.s32.totalorder %s31, 3
        // Predicated region
        $region65: #{tpu_custom_call.1} parent=59 // pred_check
          %p725 = pneg %p724
        $region66: #{tpu_custom_call.1} parent=59 // pred_check_branch
          %727 = sbr.rel (%p725) target = $region68
        $region67: #{tpu_custom_call.1} parent=59 // pred_region
          %v728 = vld [vmem:[#allocation2] sm:$0xff]
          %v729 = vld [vmem:[%s9] sm:$0x1]
          %v731 = vperm.slane %v729, 0
          %v733 = vadd.f32 %v728, %v731
          %734 = vst.msk [vmem:[%s483] sm:$0xff] %vm539, %v733
        $region68: #{tpu_custom_call.1} parent=59 // pred_fallthru
          _
        %s735 = sand.u32 %s310, 1
        %s736 = scalar_lea.sflag [#allocation4], %s735
        %s737 = sand.u32 %s310, 1
        %s738 = smul.addr %s737, 8
        %s739 = scalar_lea.vmem [#allocation3], %s738
        // Predicated region
        $region69: #{tpu_custom_call.1} parent=59 // pred_check
          %p740 = pneg %p320
        $region70: #{tpu_custom_call.1} parent=59 // pred_check_branch
          %742 = sbr.rel (%p740) target = $region72
        $region71: #{tpu_custom_call.1} parent=59 // pred_region
          %744 = vsyncadd %s736, 0
          %s745 = sadd.s32 %s30, %s29
          %s746 = smul.addr %s745, 8
          %s747 = scalar_lea.hbm %s10, %s746
          %s749 = sshll.u32 %s739, 4
          %s750 = int_to_ptr.vmem [resolvable:$true] %s749
          %s751 = sshll.u32 %s747, 4
          %s752 = int_to_ptr.hbm [resolvable:$true] %s751
          %754 = dma.vmem_to_hbm [thread:$0]  %s750, 128, %s752, %s736
        $region72: #{tpu_custom_call.1} parent=59 // pred_fallthru
          _
      $region60: #{tpu_custom_call.1} parent=5 // pred_fallthru
        _
      %p755 = scmp.le.s32.totalorder 2, %s19
      // Predicated region
      $region73: #{tpu_custom_call.1} parent=5 // pred_check
        %p756 = pneg %p755
      $region74: #{tpu_custom_call.1} parent=5 // pred_check_branch
        %758 = sbr.rel (%p756) target = $region76
      $region75: #{tpu_custom_call.1} parent=5 // pred_region
        %s759 = ssub.s32 %s19, 2
        // Predicated region
        $region77: #{tpu_custom_call.1} parent=75 // pred_check
          %p760 = pneg %p326
        $region78: #{tpu_custom_call.1} parent=75 // pred_check_branch
          %762 = sbr.rel (%p760) target = $region80
        $region79: #{tpu_custom_call.1} parent=75 // pred_region
          %s763 = sand.u32 %s311, 1
          %s764 = scalar_lea.sflag [#allocation4], %s763
          %s765 = sand.u32 %s311, 1
          %s766 = smul.addr %s765, 8
          %s767 = scalar_lea.vmem [#allocation3], %s766
          %769 = dma.done %s764, 128
        $region80: #{tpu_custom_call.1} parent=75 // pred_fallthru
          _
      $region76: #{tpu_custom_call.1} parent=5 // pred_fallthru
        _
    $region6: #{tpu_custom_call.1} parent=1 // loop_footer
      %s23 = sadd.s32 1, %s19
    $region7: #{tpu_custom_call.1} parent=1 // loop_footer_branch
      %18 = sbr.rel target = $region3
    $region8: #{tpu_custom_call.1} parent=1 // loop_exit
      _
    %770 = vsyncpa [#allocation4], 1
    %s771 = scalar_lea.sflag [#allocation4], 1
    %772 = vsyncpa %s771, 1

</llo_original>
